<compile_context>
chip_gen: v7x
topology: tpu7x:2x2x1
jax: 0.10.0
libtpu: 0.0.40
codegen_flags: <defaults>
</compile_context>

<pallas_src>
import jax
import jax.numpy as jnp
from jax.experimental import pallas as pl
from jax.experimental.pallas import tpu as pltpu

HIDDEN = 64          # logical hidden width (matches nn.Linear(_, 64))
LANE = 128           # padded lane width for hidden layers (MXU/VPU native)


def qnetwork_kernel(x_ref, w1_ref, b1_ref, w2_ref, b2_ref, w3_ref, b3_ref, o_ref):
    """Fused forward: relu(x@W1+b1) -> relu(.@W2+b2) -> .@W3+b3 (lane-padded).

    x and the weights are bf16 (MXU-native); accumulation, bias and ReLU are f32.
    Only the first `action_size` (= o_ref.shape[1]) output columns are stored.
    """
    x = x_ref[...]                                            # already bf16

    h1 = jnp.dot(x, w1_ref[...], preferred_element_type=jnp.float32) + b1_ref[...]
    h1 = jnp.maximum(h1, 0.0)                                 # padded lanes stay 0

    h2 = jnp.dot(h1.astype(jnp.bfloat16), w2_ref[...],
                 preferred_element_type=jnp.float32) + b2_ref[...]
    h2 = jnp.maximum(h2, 0.0)

    q = jnp.dot(h2.astype(jnp.bfloat16), w3_ref[...],
                preferred_element_type=jnp.float32) + b3_ref[...]

    # Narrow store: only the real action columns go back to HBM.  The padded
    # columns are exactly zero anyway, so this is lossless and ~32x less output
    # traffic than writing the full (tile_b, 128) f32 tile.
    o_ref[...] = q[:, :o_ref.shape[1]].astype(o_ref.dtype)


def prepare_params(params):
    """One-time prep: zero-pad to 128 lanes, cast matmul weights to bf16.

    Zero padding is exact: padded hidden lanes compute relu(0 + 0) = 0 and the
    padded rows/cols of W2/W3 only ever multiply those zeros, so the first
    `action_size` output columns are identical to the unpadded computation.
    NOTE: bf16 weights give ~1e-2 relative error vs a pure-f32 PyTorch forward.
    """
    w1, b1, w2, b2, w3, b3 = params
    S = w1.shape[0]
    action_size = w3.shape[1]
    out_lane = max(LANE, -(-action_size // LANE) * LANE)   # >= action_size, mult of 128

    def pad(a, rows, cols, dtype):
        out = jnp.zeros((rows, cols), dtype)
        return out.at[:a.shape[0], :a.shape[1]].set(a.astype(dtype))

    padded = (
        pad(w1, S, LANE, jnp.bfloat16),        pad(b1, 1, LANE, jnp.float32),
        pad(w2, LANE, LANE, jnp.bfloat16),     pad(b2, 1, LANE, jnp.float32),
        pad(w3, LANE, out_lane, jnp.bfloat16), pad(b3, 1, out_lane, jnp.float32),
    )
    return padded, action_size


def _pick_tile_b(B, max_tile=2048):
    """Batch tile: large tiles amortize the ~0.35 us/grid-step overhead; always
    aim for >= 2 grid steps (except tiny batches) so both v7x TensorCores get
    work; round to a multiple of 16 (bf16 sublane packing) and pick the number
    of steps to minimize batch padding (e.g. B=257 -> tile 136, not 256)."""
    n_steps = max(1 if B <= 16 else 2, pl.cdiv(B, max_tile))
    return -(-pl.cdiv(B, n_steps) // 16) * 16


def qnetwork_forward(state, padded_params, action_size, *, tile_b=None):
    """state: (B, state_size) -> (B, action_size) f32 Q-values."""
    w1p, b1p, w2p, b2p, w3p, b3p = padded_params
    B, S = state.shape

    if tile_b is None:
        tile_b = _pick_tile_b(B)
    grid_b = pl.cdiv(B, tile_b)
    Bp = grid_b * tile_b

    # bf16 x read (half the bytes; it is consumed in bf16 by the MXU anyway),
    # fused with the batch padding on the host side.
    x = state.astype(jnp.bfloat16)
    if Bp != B:
        x = jnp.pad(x, ((0, Bp - B), (0, 0)))

    # Grid-invariant (VMEM-resident) weights/biases: index_map is always (0, 0).
    resident = lambda a: pl.BlockSpec(a.shape, lambda i: (0, 0))

    flops = 2 * Bp * LANE * (S + 2 * LANE) + 5 * Bp * LANE        # matmuls + bias/relu
    bytes_accessed = (Bp * S * 2 + Bp * action_size * 4
                      + sum(int(p.size) * p.dtype.itemsize for p in padded_params))

    out = pl.pallas_call(
        qnetwork_kernel,
        out_shape=jax.ShapeDtypeStruct((Bp, action_size), jnp.float32),
        grid=(grid_b,),
        in_specs=[
            pl.BlockSpec((tile_b, S), lambda i: (i, 0)),          # x: tiled over batch
            resident(w1p), resident(b1p),
            resident(w2p), resident(b2p),
            resident(w3p), resident(b3p),
        ],
        # Narrow output block: last dim == full array dim, so action_size < 128 is legal.
        out_specs=pl.BlockSpec((tile_b, action_size), lambda i: (i, 0)),
        compiler_params=pltpu.CompilerParams(
            dimension_semantics=("parallel",)),                    # 2 TCs on v7x
        cost_estimate=pl.CostEstimate(flops=flops, transcendentals=0,
                                      bytes_accessed=bytes_accessed),
    )(x, w1p, b1p, w2p, b2p, w3p, b3p)

    if Bp != B:
        out = out[:B]          # rows only; columns are already narrow (tiny copy)
    return out


def init_params(key, state_size, hidden, action_size):
    """Deterministic init mimicking nn.Linear default (U(-1/sqrt(fan_in), +))."""
    keys = jax.random.split(key, 6)

    def linear(kw, kb, fan_in, fan_out):
        bound = 1.0 / jnp.sqrt(jnp.float32(fan_in))
        w = jax.random.uniform(kw, (fan_in, fan_out), jnp.float32, -bound, bound)
        b = jax.random.uniform(kb, (1, fan_out), jnp.float32, -bound, bound)
        return w, b

    w1, b1 = linear(keys[0], keys[1], state_size, hidden)
    w2, b2 = linear(keys[2], keys[3], hidden, hidden)
    w3, b3 = linear(keys[4], keys[5], hidden, action_size)
    return (w1, b1, w2, b2, w3, b3)


if __name__ == "__main__":
    key = jax.random.PRNGKey(0)
    k_param, k_state = jax.random.split(key)

    batch = 64
    state_size = 8
    action_size = 4

    params = init_params(k_param, state_size, HIDDEN, action_size)
    state = jax.random.normal(k_state, (batch, state_size), jnp.float32)

    padded_params, _ = prepare_params(params)
    # Auto tile selection -> tile_b=32, grid=(2,): exercises the pipelined batch
    # grid, the narrow lane-masked output store, and the >=2-step megacore rule.
    q_values = qnetwork_forward(state, padded_params, action_size)
    q_values = jax.block_until_ready(q_values)

    # Pure-JAX reference using the same bf16-weight / f32-accumulate recipe the
    # kernel uses (matches PyTorch f32 forward to bf16 weight precision).
    w1, b1, w2, b2, w3, b3 = params
    xb = state.astype(jnp.bfloat16)
    h1 = jnp.maximum(jnp.dot(xb, w1.astype(jnp.bfloat16),
                             preferred_element_type=jnp.float32) + b1, 0.0)
    h2 = jnp.maximum(jnp.dot(h1.astype(jnp.bfloat16), w2.astype(jnp.bfloat16),
                             preferred_element_type=jnp.float32) + b2, 0.0)
    ref = jnp.dot(h2.astype(jnp.bfloat16), w3.astype(jnp.bfloat16),
                  preferred_element_type=jnp.float32) + b3

    assert q_values.shape == (batch, action_size)
    assert jnp.allclose(q_values, ref, atol=1e-3, rtol=1e-3), (
        float(jnp.max(jnp.abs(q_values - ref))))
    print("KERNEL_OK")
</pallas_src>

<mosaic_0001>
module attributes {stable_mosaic.version = 11 : i64} {
  func.func @qnetwork_kernel(%arg0: i32, %arg1: memref<32x8xbf16, #tpu.memory_space<vmem>>, %arg2: memref<8x128xbf16, #tpu.memory_space<vmem>>, %arg3: memref<1x128xf32, #tpu.memory_space<vmem>>, %arg4: memref<128x128xbf16, #tpu.memory_space<vmem>>, %arg5: memref<1x128xf32, #tpu.memory_space<vmem>>, %arg6: memref<128x128xbf16, #tpu.memory_space<vmem>>, %arg7: memref<1x128xf32, #tpu.memory_space<vmem>>, %arg8: memref<32x4xf32, #tpu.memory_space<vmem>>) attributes {dimension_semantics = [#tpu.dimension_semantics<parallel>], iteration_bounds = array<i64: 2>, scalar_prefetch = 0 : i64, scratch_operands = 0 : i64, tpu.core_type = #tpu.core_type<tc>, window_params = [{transform_indices = @transform_0, window_bounds = array<i64: 32, 8>}, {pipeline_mode = #tpu.pipeline_mode<synchronous>, transform_indices = @transform_1, window_bounds = array<i64: 8, 128>}, {pipeline_mode = #tpu.pipeline_mode<synchronous>, transform_indices = @transform_2, window_bounds = array<i64: 1, 128>}, {pipeline_mode = #tpu.pipeline_mode<synchronous>, transform_indices = @transform_3, window_bounds = array<i64: 128, 128>}, {pipeline_mode = #tpu.pipeline_mode<synchronous>, transform_indices = @transform_4, window_bounds = array<i64: 1, 128>}, {pipeline_mode = #tpu.pipeline_mode<synchronous>, transform_indices = @transform_5, window_bounds = array<i64: 128, 128>}, {pipeline_mode = #tpu.pipeline_mode<synchronous>, transform_indices = @transform_6, window_bounds = array<i64: 1, 128>}, {transform_indices = @transform_7, window_bounds = array<i64: 32, 4>}]} {
    %c0 = arith.constant 0 : index
    %c0_0 = arith.constant 0 : index
    %0 = vector.load %arg1[%c0, %c0_0] : memref<32x8xbf16, #tpu.memory_space<vmem>>, vector<32x8xbf16>
    %c0_1 = arith.constant 0 : index
    %c0_2 = arith.constant 0 : index
    %1 = vector.load %arg2[%c0_1, %c0_2] : memref<8x128xbf16, #tpu.memory_space<vmem>>, vector<8x128xbf16>
    %cst = arith.constant dense<0.000000e+00> : vector<32x128xf32>
    %2 = tpu.matmul %0, %1, %cst {dimension_numbers = #tpu.dot_dimension_numbers<[1], [0], [0], [1], [0, 0, 1, 1], [], []>} : vector<32x8xbf16>, vector<8x128xbf16>, vector<32x128xf32> -> vector<32x128xf32>
    %c0_3 = arith.constant 0 : index
    %c0_4 = arith.constant 0 : index
    %3 = vector.load %arg3[%c0_3, %c0_4] : memref<1x128xf32, #tpu.memory_space<vmem>>, vector<1x128xf32>
    %4 = vector.broadcast %3 : vector<1x128xf32> to vector<32x128xf32>
    %5 = arith.addf %2, %4 : vector<32x128xf32>
    %cst_5 = arith.constant 0.000000e+00 : f32
    %6 = vector.broadcast %cst_5 : f32 to vector<32x128xf32>
    %7 = arith.maximumf %5, %6 : vector<32x128xf32>
    %8 = arith.truncf %7 : vector<32x128xf32> to vector<32x128xbf16>
    %c0_6 = arith.constant 0 : index
    %c0_7 = arith.constant 0 : index
    %9 = vector.load %arg4[%c0_6, %c0_7] : memref<128x128xbf16, #tpu.memory_space<vmem>>, vector<128x128xbf16>
    %cst_8 = arith.constant dense<0.000000e+00> : vector<32x128xf32>
    %10 = tpu.matmul %8, %9, %cst_8 {dimension_numbers = #tpu.dot_dimension_numbers<[1], [0], [0], [1], [0, 0, 1, 1], [], []>} : vector<32x128xbf16>, vector<128x128xbf16>, vector<32x128xf32> -> vector<32x128xf32>
    %c0_9 = arith.constant 0 : index
    %c0_10 = arith.constant 0 : index
    %11 = vector.load %arg5[%c0_9, %c0_10] : memref<1x128xf32, #tpu.memory_space<vmem>>, vector<1x128xf32>
    %12 = vector.broadcast %11 : vector<1x128xf32> to vector<32x128xf32>
    %13 = arith.addf %10, %12 : vector<32x128xf32>
    %cst_11 = arith.constant 0.000000e+00 : f32
    %14 = vector.broadcast %cst_11 : f32 to vector<32x128xf32>
    %15 = arith.maximumf %13, %14 : vector<32x128xf32>
    %16 = arith.truncf %15 : vector<32x128xf32> to vector<32x128xbf16>
    %c0_12 = arith.constant 0 : index
    %c0_13 = arith.constant 0 : index
    %17 = vector.load %arg6[%c0_12, %c0_13] : memref<128x128xbf16, #tpu.memory_space<vmem>>, vector<128x128xbf16>
    %cst_14 = arith.constant dense<0.000000e+00> : vector<32x128xf32>
    %18 = tpu.matmul %16, %17, %cst_14 {dimension_numbers = #tpu.dot_dimension_numbers<[1], [0], [0], [1], [0, 0, 1, 1], [], []>} : vector<32x128xbf16>, vector<128x128xbf16>, vector<32x128xf32> -> vector<32x128xf32>
    %c0_15 = arith.constant 0 : index
    %c0_16 = arith.constant 0 : index
    %19 = vector.load %arg7[%c0_15, %c0_16] : memref<1x128xf32, #tpu.memory_space<vmem>>, vector<1x128xf32>
    %20 = vector.broadcast %19 : vector<1x128xf32> to vector<32x128xf32>
    %21 = arith.addf %18, %20 : vector<32x128xf32>
    %22 = vector.extract_strided_slice %21 {offsets = [0, 0], sizes = [32, 4], strides = [1, 1]} : vector<32x128xf32> to vector<32x4xf32>
    %c0_17 = arith.constant 0 : index
    %c0_18 = arith.constant 0 : index
    %23 = vector.load %arg8[%c0_17, %c0_18] : memref<32x4xf32, #tpu.memory_space<vmem>>, vector<32x4xf32>
    tpu.vector_store %arg8[%c0_17, %c0_18], %22 {strides = array<i32>} : memref<32x4xf32, #tpu.memory_space<vmem>>, vector<32x4xf32>,
    return
  }
  func.func @transform_0(%arg0: i32) -> (i32, i32) {
    %c0_i32 = arith.constant 0 : i32
    %c0_i32_0 = arith.constant 0 : i32
    return %arg0, %c0_i32 : i32, i32
  }
  func.func @transform_1(%arg0: i32) -> (i32, i32) {
    %c0_i32 = arith.constant 0 : i32
    %c0_i32_0 = arith.constant 0 : i32
    %c0_i32_1 = arith.constant 0 : i32
    return %c0_i32, %c0_i32_0 : i32, i32
  }
  func.func @transform_2(%arg0: i32) -> (i32, i32) {
    %c0_i32 = arith.constant 0 : i32
    %c0_i32_0 = arith.constant 0 : i32
    %c0_i32_1 = arith.constant 0 : i32
    return %c0_i32, %c0_i32_0 : i32, i32
  }
  func.func @transform_3(%arg0: i32) -> (i32, i32) {
    %c0_i32 = arith.constant 0 : i32
    %c0_i32_0 = arith.constant 0 : i32
    %c0_i32_1 = arith.constant 0 : i32
    return %c0_i32, %c0_i32_0 : i32, i32
  }
  func.func @transform_4(%arg0: i32) -> (i32, i32) {
    %c0_i32 = arith.constant 0 : i32
    %c0_i32_0 = arith.constant 0 : i32
    %c0_i32_1 = arith.constant 0 : i32
    return %c0_i32, %c0_i32_0 : i32, i32
  }
  func.func @transform_5(%arg0: i32) -> (i32, i32) {
    %c0_i32 = arith.constant 0 : i32
    %c0_i32_0 = arith.constant 0 : i32
    %c0_i32_1 = arith.constant 0 : i32
    return %c0_i32, %c0_i32_0 : i32, i32
  }
  func.func @transform_6(%arg0: i32) -> (i32, i32) {
    %c0_i32 = arith.constant 0 : i32
    %c0_i32_0 = arith.constant 0 : i32
    %c0_i32_1 = arith.constant 0 : i32
    return %c0_i32, %c0_i32_0 : i32, i32
  }
  func.func @transform_7(%arg0: i32) -> (i32, i32) {
    %c0_i32 = arith.constant 0 : i32
    %c0_i32_0 = arith.constant 0 : i32
    return %arg0, %c0_i32 : i32, i32
  }
}

</mosaic_0001>

<llo_original>
// kernel: tpu_custom_call.1
$region0: #{tpu_custom_call.1}
  #allocation0 [shape = 'u32[]', space=smem, size = 0x4, offset = 0x4, fixed_abs, tag = 'smem constant byte address 0x4 - core index']
  #allocation1 [shape = 'u32[144,128]{1,0:T(1,128)}', space=vmem, size = 0x12000, scoped, tag = 'internal scratch']
  %s0 = inlined_call_operand.vmem [shape: bf16[64,8], index: 0, kind: input, shape index: {}]
  %s1 = inlined_call_operand.vmem [shape: bf16[8,128], index: 1, kind: input, shape index: {}]
  %s2 = inlined_call_operand.vmem [shape: f32[1,128], index: 2, kind: input, shape index: {}]
  %s3 = inlined_call_operand.hbm [shape: bf16[128,128], index: 3, kind: input, shape index: {}]
  %s4 = inlined_call_operand.vmem [shape: f32[1,128], index: 4, kind: input, shape index: {}]
  %s5 = inlined_call_operand.hbm [shape: bf16[128,128], index: 5, kind: input, shape index: {}]
  %s6 = inlined_call_operand.vmem [shape: f32[1,128], index: 6, kind: input, shape index: {}]
  %s7 = inlined_call_operand.vmem [shape: f32[64,4], index: 7, kind: output, shape index: {}]
  %s8 = sld [smem:[#allocation0]]
  $region69: #{tpu_custom_call.1} parent=0
    _
  %s10 = ssub.s32 1, %s8
  %s11 = scalar_select 0, %s10, %s8
  $region1: #{tpu_custom_call.1} parent=0
    #allocation2 [shape = 'u8[32768]{0}', space=vmem, size = 0x8000, scoped, tag = 'input window, operand 3, single buffered']
    #allocation3 [shape = 's32[2]{0}', space=sflag, size = 0x8, scoped, tag = 'scoped memory for tpu_custom_call.1']
    #allocation4 [shape = 'u8[32768]{0}', space=vmem, size = 0x8000, scoped, tag = 'input window, operand 5, single buffered']
    #allocation5 [shape = 's32[1]{0}', space=sflag, size = 0x4, scoped, tag = 'scoped memory for tpu_custom_call.1']
    %12 = vsyncpa [#allocation3], 0
    %13 = vsyncpa [#allocation5], 0
    loop: start=0, step=1, limit=4
    $region2: #{tpu_custom_call.1} parent=1 // loop_pre_header
      _
    $region3: #{tpu_custom_call.1} parent=1 // loop_header
      %s15 = sphi 0, %s19
      %p16 = scmp.ge.s32.totalorder %s15, 4
      %s25 = sphi 0, %s27
      %s28 = sphi 0, %s25
      %s29 = sphi 0, %s28
      %s45 = sphi 0, %s29
      %s49 = sphi 0, %s49
      %s51 = sphi 0, %s49
      %s52 = sphi 0, %s51
      %s66 = sphi 0, %s52
      %s70 = sphi 0, %s70
      %s72 = sphi 0, %s70
      %s73 = sphi 0, %s72
      %s87 = sphi 0, %s73
      %s91 = sphi 0, %s91
      %s93 = sphi 0, %s91
      %s94 = sphi 0, %s93
      %s108 = sphi 0, %s94
      %s112 = sphi 0, %s112
      %s114 = sphi 0, %s112
      %s115 = sphi 0, %s114
      %s129 = sphi 0, %s115
      %s133 = sphi 0, %s133
      %s135 = sphi 0, %s133
      %s136 = sphi 0, %s135
      %s150 = sphi 0, %s136
      %s154 = sphi 0, %s154
      %s156 = sphi 0, %s154
      %s157 = sphi 0, %s156
      %s171 = sphi 0, %s157
      %s177 = sphi 0, %s179
      %s180 = sphi 0, %s177
      %s181 = sphi 0, %s180
      %s197 = sphi 0, %s181
    $region4: #{tpu_custom_call.1} parent=1 // loop_header_branch
      %18 = sbr.rel (%p16) target = $region8
    $region5: #{tpu_custom_call.1} parent=1 // loop_body
      %s20 = ssub.s32 %s15, 1
      %s21 = ssub.s32 %s15, 2
      %s22 = sadd.s32 %s15, 1
      %s23 = ssub.s32 %s15, %s22
      %p24 = scmp.eq.s32.totalorder %s23, 0
      %s26 = sadd.s32 %s25, 1
      %s27 = scalar_select %p24, %s25, %s26
      %p30 = pneg %p24
      %p31 = scmp.eq.s32.totalorder %s15, 1
      %p32 = por %p30, %p31
      %p33 = scmp.ne.s32.totalorder %s25, %s28
      %p34 = scmp.eq.s32.totalorder %s15, 0
      %p35 = por %p33, %p34
      %p36 = scmp.ne.s32.totalorder %s25, %s28
      %p37 = scmp.eq.s32.totalorder %s20, 1
      %p38 = por %p36, %p37
      %p39 = scmp.ne.s32.totalorder %s28, %s29
      %p40 = scmp.eq.s32.totalorder %s20, 0
      %p41 = por %p39, %p40
      %p42 = scmp.ne.s32.totalorder %s28, %s29
      %p43 = scmp.eq.s32.totalorder %s21, 1
      %p44 = por %p42, %p43
      %p46 = scmp.ne.s32.totalorder %s29, %s45
      %p47 = scmp.eq.s32.totalorder %s21, 0
      %p48 = por %p46, %p47
      %s50 = sadd.s32 %s49, 1
      %p53 = scmp.eq.s32.totalorder %s15, 1
      %p54 = scmp.ne.s32.totalorder %s49, %s51
      %p55 = scmp.eq.s32.totalorder %s15, 0
      %p56 = por %p54, %p55
      %p57 = scmp.ne.s32.totalorder %s49, %s51
      %p58 = scmp.eq.s32.totalorder %s20, 1
      %p59 = por %p57, %p58
      %p60 = scmp.ne.s32.totalorder %s51, %s52
      %p61 = scmp.eq.s32.totalorder %s20, 0
      %p62 = por %p60, %p61
      %p63 = scmp.ne.s32.totalorder %s51, %s52
      %p64 = scmp.eq.s32.totalorder %s21, 1
      %p65 = por %p63, %p64
      %p67 = scmp.ne.s32.totalorder %s52, %s66
      %p68 = scmp.eq.s32.totalorder %s21, 0
      %p69 = por %p67, %p68
      %s71 = sadd.s32 %s70, 1
      %p74 = scmp.eq.s32.totalorder %s15, 1
      %p75 = scmp.ne.s32.totalorder %s70, %s72
      %p76 = scmp.eq.s32.totalorder %s15, 0
      %p77 = por %p75, %p76
      %p78 = scmp.ne.s32.totalorder %s70, %s72
      %p79 = scmp.eq.s32.totalorder %s20, 1
      %p80 = por %p78, %p79
      %p81 = scmp.ne.s32.totalorder %s72, %s73
      %p82 = scmp.eq.s32.totalorder %s20, 0
      %p83 = por %p81, %p82
      %p84 = scmp.ne.s32.totalorder %s72, %s73
      %p85 = scmp.eq.s32.totalorder %s21, 1
      %p86 = por %p84, %p85
      %p88 = scmp.ne.s32.totalorder %s73, %s87
      %p89 = scmp.eq.s32.totalorder %s21, 0
      %p90 = por %p88, %p89
      %s92 = sadd.s32 %s91, 1
      %p95 = scmp.eq.s32.totalorder %s15, 1
      %p96 = scmp.ne.s32.totalorder %s91, %s93
      %p97 = scmp.eq.s32.totalorder %s15, 0
      %p98 = por %p96, %p97
      %p99 = scmp.ne.s32.totalorder %s91, %s93
      %p100 = scmp.eq.s32.totalorder %s20, 1
      %p101 = por %p99, %p100
      %p102 = scmp.ne.s32.totalorder %s93, %s94
      %p103 = scmp.eq.s32.totalorder %s20, 0
      %p104 = por %p102, %p103
      %p105 = scmp.ne.s32.totalorder %s93, %s94
      %p106 = scmp.eq.s32.totalorder %s21, 1
      %p107 = por %p105, %p106
      %p109 = scmp.ne.s32.totalorder %s94, %s108
      %p110 = scmp.eq.s32.totalorder %s21, 0
      %p111 = por %p109, %p110
      %s113 = sadd.s32 %s112, 1
      %p116 = scmp.eq.s32.totalorder %s15, 1
      %p117 = scmp.ne.s32.totalorder %s112, %s114
      %p118 = scmp.eq.s32.totalorder %s15, 0
      %p119 = por %p117, %p118
      %p120 = scmp.ne.s32.totalorder %s112, %s114
      %p121 = scmp.eq.s32.totalorder %s20, 1
      %p122 = por %p120, %p121
      %p123 = scmp.ne.s32.totalorder %s114, %s115
      %p124 = scmp.eq.s32.totalorder %s20, 0
      %p125 = por %p123, %p124
      %p126 = scmp.ne.s32.totalorder %s114, %s115
      %p127 = scmp.eq.s32.totalorder %s21, 1
      %p128 = por %p126, %p127
      %p130 = scmp.ne.s32.totalorder %s115, %s129
      %p131 = scmp.eq.s32.totalorder %s21, 0
      %p132 = por %p130, %p131
      %s134 = sadd.s32 %s133, 1
      %p137 = scmp.eq.s32.totalorder %s15, 1
      %p138 = scmp.ne.s32.totalorder %s133, %s135
      %p139 = scmp.eq.s32.totalorder %s15, 0
      %p140 = por %p138, %p139
      %p141 = scmp.ne.s32.totalorder %s133, %s135
      %p142 = scmp.eq.s32.totalorder %s20, 1
      %p143 = por %p141, %p142
      %p144 = scmp.ne.s32.totalorder %s135, %s136
      %p145 = scmp.eq.s32.totalorder %s20, 0
      %p146 = por %p144, %p145
      %p147 = scmp.ne.s32.totalorder %s135, %s136
      %p148 = scmp.eq.s32.totalorder %s21, 1
      %p149 = por %p147, %p148
      %p151 = scmp.ne.s32.totalorder %s136, %s150
      %p152 = scmp.eq.s32.totalorder %s21, 0
      %p153 = por %p151, %p152
      %s155 = sadd.s32 %s154, 1
      %p158 = scmp.eq.s32.totalorder %s15, 1
      %p159 = scmp.ne.s32.totalorder %s154, %s156
      %p160 = scmp.eq.s32.totalorder %s15, 0
      %p161 = por %p159, %p160
      %p162 = scmp.ne.s32.totalorder %s154, %s156
      %p163 = scmp.eq.s32.totalorder %s20, 1
      %p164 = por %p162, %p163
      %p165 = scmp.ne.s32.totalorder %s156, %s157
      %p166 = scmp.eq.s32.totalorder %s20, 0
      %p167 = por %p165, %p166
      %p168 = scmp.ne.s32.totalorder %s156, %s157
      %p169 = scmp.eq.s32.totalorder %s21, 1
      %p170 = por %p168, %p169
      %p172 = scmp.ne.s32.totalorder %s157, %s171
      %p173 = scmp.eq.s32.totalorder %s21, 0
      %p174 = por %p172, %p173
      %s175 = ssub.s32 %s15, %s22
      %p176 = scmp.eq.s32.totalorder %s175, 0
      %s178 = sadd.s32 %s177, 1
      %s179 = scalar_select %p176, %s177, %s178
      %p182 = pneg %p176
      %p183 = scmp.eq.s32.totalorder %s15, 1
      %p184 = por %p182, %p183
      %p185 = scmp.ne.s32.totalorder %s177, %s180
      %p186 = scmp.eq.s32.totalorder %s15, 0
      %p187 = por %p185, %p186
      %p188 = scmp.ne.s32.totalorder %s177, %s180
      %p189 = scmp.eq.s32.totalorder %s20, 1
      %p190 = por %p188, %p189
      %p191 = scmp.ne.s32.totalorder %s180, %s181
      %p192 = scmp.eq.s32.totalorder %s20, 0
      %p193 = por %p191, %p192
      %p194 = scmp.ne.s32.totalorder %s180, %s181
      %p195 = scmp.eq.s32.totalorder %s21, 1
      %p196 = por %p194, %p195
      %p198 = scmp.ne.s32.totalorder %s181, %s197
      %p199 = scmp.eq.s32.totalorder %s21, 0
      %p200 = por %p198, %p199
      %p201 = scmp.le.s32.totalorder 1, %s15
      %p202 = scmp.lt.s32.totalorder %s15, 3
      %p203 = pnand %p201, %p202
      %p204 = pneg %p203
      // Predicated region
      $region9: #{tpu_custom_call.1} parent=5 // pred_check
        _
      $region10: #{tpu_custom_call.1} parent=5 // pred_check_branch
        %206 = sbr.rel (%p203) target = $region12
      $region11: #{tpu_custom_call.1} parent=5 // pred_region
        %s207 = ssub.s32 %s15, 1
        // Predicated region
        $region13: #{tpu_custom_call.1} parent=11 // pred_check
          %p208 = pneg %p62
        $region14: #{tpu_custom_call.1} parent=11 // pred_check_branch
          %210 = sbr.rel (%p208) target = $region16
        $region15: #{tpu_custom_call.1} parent=11 // pred_region
          _
        $region16: #{tpu_custom_call.1} parent=11 // pred_fallthru
          _
        // Predicated region
        $region17: #{tpu_custom_call.1} parent=11 // pred_check
          %p211 = pneg %p83
        $region18: #{tpu_custom_call.1} parent=11 // pred_check_branch
          %213 = sbr.rel (%p211) target = $region20
        $region19: #{tpu_custom_call.1} parent=11 // pred_region
          _
        $region20: #{tpu_custom_call.1} parent=11 // pred_fallthru
          _
        // Predicated region
        $region21: #{tpu_custom_call.1} parent=11 // pred_check
          %p214 = pneg %p104
        $region22: #{tpu_custom_call.1} parent=11 // pred_check_branch
          %216 = sbr.rel (%p214) target = $region24
        $region23: #{tpu_custom_call.1} parent=11 // pred_region
          %s218 = ssub.s32 1024, 1024
          %219 = vsyncadd [#allocation3], %s218
          %s220 = sshll.u32 [#allocation2], 4
          %s221 = int_to_ptr.vmem [resolvable:$true] %s220
          %226 = dma.hbm_to_vmem [thread:$0]  %s3, 1024, %s221, [#allocation3], 64, 64, 4
        $region24: #{tpu_custom_call.1} parent=11 // pred_fallthru
          _
        // Predicated region
        $region25: #{tpu_custom_call.1} parent=11 // pred_check
          %p227 = pneg %p125
        $region26: #{tpu_custom_call.1} parent=11 // pred_check_branch
          %229 = sbr.rel (%p227) target = $region28
        $region27: #{tpu_custom_call.1} parent=11 // pred_region
          _
        $region28: #{tpu_custom_call.1} parent=11 // pred_fallthru
          _
        // Predicated region
        $region29: #{tpu_custom_call.1} parent=11 // pred_check
          %p230 = pneg %p146
        $region30: #{tpu_custom_call.1} parent=11 // pred_check_branch
          %232 = sbr.rel (%p230) target = $region32
        $region31: #{tpu_custom_call.1} parent=11 // pred_region
          %s234 = ssub.s32 1024, 1024
          %235 = vsyncadd [#allocation5], %s234
          %s236 = sshll.u32 [#allocation4], 4
          %s237 = int_to_ptr.vmem [resolvable:$true] %s236
          %242 = dma.hbm_to_vmem [thread:$0]  %s5, 1024, %s237, [#allocation5], 64, 64, 4
        $region32: #{tpu_custom_call.1} parent=11 // pred_fallthru
          _
        // Predicated region
        $region33: #{tpu_custom_call.1} parent=11 // pred_check
          %p243 = pneg %p167
        $region34: #{tpu_custom_call.1} parent=11 // pred_check_branch
          %245 = sbr.rel (%p243) target = $region36
        $region35: #{tpu_custom_call.1} parent=11 // pred_region
          _
        $region36: #{tpu_custom_call.1} parent=11 // pred_fallthru
          _
      $region12: #{tpu_custom_call.1} parent=5 // pred_fallthru
        _
      %p246 = scmp.lt.s32.totalorder %s15, 2
      // Predicated region
      $region37: #{tpu_custom_call.1} parent=5 // pred_check
        %p247 = pneg %p246
      $region38: #{tpu_custom_call.1} parent=5 // pred_check_branch
        %249 = sbr.rel (%p247) target = $region40
      $region39: #{tpu_custom_call.1} parent=5 // pred_region
        // Predicated region
        $region41: #{tpu_custom_call.1} parent=39 // pred_check
          %p250 = pneg %p35
        $region42: #{tpu_custom_call.1} parent=39 // pred_check_branch
          %252 = sbr.rel (%p250) target = $region44
        $region43: #{tpu_custom_call.1} parent=39 // pred_region
          %s253 = smul.u32 4, %s15
          %p254 = scmp.lt.s32.totalorder %s253, 7
          %s255 = scalar_select %p254, %s253, 7
          %s256 = smul.addr %s255, 4
          %s257 = scalar_lea.vmem %s0, %s256
          %s258 = smul.u32 4, %s15
        $region44: #{tpu_custom_call.1} parent=39 // pred_fallthru
          _
      $region40: #{tpu_custom_call.1} parent=5 // pred_fallthru
        _
      %p259 = scmp.le.s32.totalorder 1, %s15
      %p260 = scmp.lt.s32.totalorder %s15, 3
      %p261 = pnand %p259, %p260
      %p262 = pneg %p261
      // Predicated region
      $region45: #{tpu_custom_call.1} parent=5 // pred_check
        _
      $region46: #{tpu_custom_call.1} parent=5 // pred_check_branch
        %264 = sbr.rel (%p261) target = $region48
      $region47: #{tpu_custom_call.1} parent=5 // pred_region
        %s265 = ssub.s32 %s15, 1
        // Predicated region
        $region49: #{tpu_custom_call.1} parent=47 // pred_check
          %p266 = pneg %p104
        $region50: #{tpu_custom_call.1} parent=47 // pred_check_branch
          %268 = sbr.rel (%p266) target = $region52
        $region51: #{tpu_custom_call.1} parent=47 // pred_region
          %269 = dma.done [#allocation3], 1024
        $region52: #{tpu_custom_call.1} parent=47 // pred_fallthru
          _
        // Predicated region
        $region53: #{tpu_custom_call.1} parent=47 // pred_check
          %p270 = pneg %p146
        $region54: #{tpu_custom_call.1} parent=47 // pred_check_branch
          %272 = sbr.rel (%p270) target = $region56
        $region55: #{tpu_custom_call.1} parent=47 // pred_region
          %273 = dma.done [#allocation5], 1024
        $region56: #{tpu_custom_call.1} parent=47 // pred_fallthru
          _
        %s274 = smul.u32 4, %s20
        %p275 = scmp.lt.s32.totalorder %s274, 7
        %s276 = scalar_select %p275, %s274, 7
        %s277 = smul.addr %s276, 4
        %s278 = scalar_lea.vmem %s0, %s277
        %p279 = pneg %p41
        %p280 = pneg %p38
        %p281 = pneg %p62
        %p282 = pneg %p59
        %p283 = pneg %p83
        %p284 = pneg %p80
        %p285 = pneg %p104
        %p286 = pneg %p101
        %p287 = pneg %p125
        %p288 = pneg %p122
        %p289 = pneg %p146
        %p290 = pneg %p143
        %p291 = pneg %p167
        %p292 = pneg %p164
        %p293 = pneg %p193
        %p294 = pneg %p190
        %s295 = smul.u32 4, %s20
        %p296 = scmp.lt.s32.totalorder %s295, 7
        %s297 = scalar_select %p296, %s295, 7
        %s298 = smul.addr %s297, 8
        %s299 = scalar_lea.vmem %s7, %s298
        %s300 = smul.u32 4, %s20
        %p301 = scmp.lt.s32.totalorder %s300, 7
        %s302 = scalar_select %p301, %s300, 7
        %s303 = smul.addr %s302, 4
        %s304 = scalar_lea.vmem %s0, %s303
        %s305 = smul.u32 4, %s20
        %s306 = smul.u32 4, %s20
        %p307 = scmp.lt.s32.totalorder %s306, 7
        %s308 = scalar_select %p307, %s306, 7
        %s309 = smul.addr %s308, 8
        %s310 = scalar_lea.vmem %s7, %s309
        %s311 = smul.u32 4, %s20
        %v313 = vld [vmem:[%s304] sm:$0xf]
        %v314 = vld [vmem:[%s304 + $0x4] sm:$0xf]
        %v315 = vld [vmem:[%s304 + $0x8] sm:$0xf]
        %v316 = vld [vmem:[%s304 + $0xc] sm:$0xf]
        %v317 = vld [vmem:[%s1] sm:$0xf]
        %v318 = vld [vmem:[%s2] sm:$0x1]
        %v320 = vlaneseq
        %v321 = vshrl.u32 %v320, 7
        %v322 = vsub.s32 0, %v321
        %v323 = vrot.slane %v318, %v322
        %v329 = vunpack.c.l.b16 %v313
        %v330 = vunpack.c.l.b16 %v314
        %v331 = vunpack.c.l.b16 %v315
        %v332 = vunpack.c.l.b16 %v316
        %v333 = vpack.c.b16 %v330, %v329
        %v334 = vpack.c.b16 %v332, %v331
        %vm335 = vcmask 64512
        %v337 = vsel %vm335, %v333, 0
        %v340 = vsel %vm335, %v334, 0
        %vm342 = vcmask 1043456
        %v344 = vsel %vm342, %v317, 0
        %346 = vmatprep.subr.bf16.mxu0 0
        %347 = vmatpush1.bf16.msra.mxu0 %v344
        %348 = vmatprep.subr.bf16.mxu0 0
        %349 = vmatpush1.bf16.msra.mxu0 0
        %350 = vmatprep.subr.bf16.mxu0 0
        %351 = vmatpush1.bf16.msra.mxu0 0
        %352 = vmatprep.subr.bf16.mxu0 0
        %353 = vmatpush1.bf16.msra.mxu0 0
        %354 = vmatprep.subr.bf16.mxu0 0
        %355 = vmatpush1.bf16.msra.mxu0 0
        %356 = vmatprep.subr.bf16.mxu0 0
        %357 = vmatpush1.bf16.msra.mxu0 0
        %358 = vmatprep.subr.bf16.mxu0 0
        %359 = vmatpush1.bf16.msra.mxu0 0
        %360 = vmatprep.subr.bf16.mxu0 0
        %361 = vmatpush1.bf16.msra.mxu0 0
        %362 = vmatprep.subr.bf16.mxu0 0
        %363 = vmatpush1.bf16.msra.mxu0 0
        %364 = vmatprep.subr.bf16.mxu0 0
        %365 = vmatpush1.bf16.msra.mxu0 0
        %366 = vmatprep.subr.bf16.mxu0 0
        %367 = vmatpush1.bf16.msra.mxu0 0
        %368 = vmatprep.subr.bf16.mxu0 0
        %369 = vmatpush1.bf16.msra.mxu0 0
        %370 = vmatprep.subr.bf16.mxu0 0
        %371 = vmatpush1.bf16.msra.mxu0 0
        %372 = vmatprep.subr.bf16.mxu0 0
        %373 = vmatpush1.bf16.msra.mxu0 0
        %374 = vmatprep.subr.bf16.mxu0 0
        %375 = vmatpush1.bf16.msra.mxu0 0
        %376 = vmatprep.subr.bf16.mxu0 0
        %377 = vmatpush1.bf16.msra.mxu0 0
        %378 = vmatprep.mubr.bf16.mxu0 0
        %379 = vmatmul.mubr.bf16.gmra.mrb[0].mxu0 %v337
        %v380 = vpop.f32.mrb[0].mxu0
        %v381 = vadd.f32 %v323, %v380
        %v382 = vpop.f32.mrb[0].mxu0
        %v383 = vpop.f32.mrb[0].mxu0
        %v384 = vadd.f32 %v323, %v383
        %v385 = vpop.f32.mrb[0].mxu0
        %386 = vmatprep.mubr.bf16.mxu0 0
        %387 = vmatmul.mubr.bf16.gmra.mrb[0].mxu0 %v340
        %v388 = vpop.f32.mrb[0].mxu0
        %v389 = vadd.f32 %v323, %v388
        %v390 = vpop.f32.mrb[0].mxu0
        %v391 = vpop.f32.mrb[0].mxu0
        %v392 = vadd.f32 %v323, %v391
        %v393 = vpop.f32.mrb[0].mxu0
        %394 = vdwg.mxu0
        %v395 = vmax.f32 %v381, 0.0
        %v396 = vmax.f32 %v384, 0.0
        %v397 = vmax.f32 %v389, 0.0
        %v398 = vmax.f32 %v392, 0.0
        %v399 = vpack.c.bf16 %v396, %v395
        %v400 = vpack.c.bf16 %v398, %v397
        %v401 = vld [vmem:[#allocation2] sm:$0xf]
        %v402 = vld [vmem:[#allocation2 + $0x4] sm:$0xf]
        %v403 = vld [vmem:[#allocation2 + $0x8] sm:$0xf]
        %v404 = vld [vmem:[#allocation2 + $0xc] sm:$0xf]
        %v405 = vld [vmem:[#allocation2 + $0x10] sm:$0xf]
        %v406 = vld [vmem:[#allocation2 + $0x14] sm:$0xf]
        %v407 = vld [vmem:[#allocation2 + $0x18] sm:$0xf]
        %v408 = vld [vmem:[#allocation2 + $0x1c] sm:$0xf]
        %v409 = vld [vmem:[#allocation2 + $0x20] sm:$0xf]
        %v410 = vld [vmem:[#allocation2 + $0x24] sm:$0xf]
        %v411 = vld [vmem:[#allocation2 + $0x28] sm:$0xf]
        %v412 = vld [vmem:[#allocation2 + $0x2c] sm:$0xf]
        %v413 = vld [vmem:[#allocation2 + $0x30] sm:$0xf]
        %v414 = vld [vmem:[#allocation2 + $0x34] sm:$0xf]
        %v415 = vld [vmem:[#allocation2 + $0x38] sm:$0xf]
        %v416 = vld [vmem:[#allocation2 + $0x3c] sm:$0xf]
        %v417 = vld [vmem:[%s4] sm:$0x1]
        %v419 = vlaneseq
        %v420 = vshrl.u32 %v419, 7
        %v421 = vsub.s32 0, %v420
        %v422 = vrot.slane %v417, %v421
        %v440 = vunpack.c.l.b16 %v401
        %v441 = vunpack.c.l.b16 %v402
        %v442 = vunpack.c.l.b16 %v403
        %v443 = vunpack.c.l.b16 %v404
        %v444 = vunpack.c.l.b16 %v405
        %v445 = vunpack.c.l.b16 %v406
        %v446 = vunpack.c.l.b16 %v407
        %v447 = vunpack.c.l.b16 %v408
        %v448 = vunpack.c.l.b16 %v409
        %v449 = vunpack.c.l.b16 %v410
        %v450 = vunpack.c.l.b16 %v411
        %v451 = vunpack.c.l.b16 %v412
        %v452 = vunpack.c.l.b16 %v413
        %v453 = vunpack.c.l.b16 %v414
        %v454 = vunpack.c.l.b16 %v415
        %v455 = vunpack.c.l.b16 %v416
        %v456 = vpack.c.b16 %v441, %v440
        %v457 = vpack.c.b16 %v443, %v442
        %v458 = vpack.c.b16 %v445, %v444
        %v459 = vpack.c.b16 %v447, %v446
        %v460 = vpack.c.b16 %v449, %v448
        %v461 = vpack.c.b16 %v451, %v450
        %v462 = vpack.c.b16 %v453, %v452
        %v463 = vpack.c.b16 %v455, %v454
        %472 = vmatprep.subr.bf16.mxu0 0
        %473 = vmatpush1.bf16.msra.mxu0 %v456
        %474 = vmatprep.subr.bf16.mxu0 0
        %475 = vmatpush1.bf16.msra.mxu0 %v457
        %476 = vmatprep.subr.bf16.mxu0 0
        %477 = vmatpush1.bf16.msra.mxu0 %v458
        %478 = vmatprep.subr.bf16.mxu0 0
        %479 = vmatpush1.bf16.msra.mxu0 %v459
        %480 = vmatprep.subr.bf16.mxu0 0
        %481 = vmatpush1.bf16.msra.mxu0 %v460
        %482 = vmatprep.subr.bf16.mxu0 0
        %483 = vmatpush1.bf16.msra.mxu0 %v461
        %484 = vmatprep.subr.bf16.mxu0 0
        %485 = vmatpush1.bf16.msra.mxu0 %v462
        %486 = vmatprep.subr.bf16.mxu0 0
        %487 = vmatpush1.bf16.msra.mxu0 %v463
        %488 = vmatprep.subr.bf16.mxu0 0
        %489 = vmatpush1.bf16.msra.mxu0 0
        %490 = vmatprep.subr.bf16.mxu0 0
        %491 = vmatpush1.bf16.msra.mxu0 0
        %492 = vmatprep.subr.bf16.mxu0 0
        %493 = vmatpush1.bf16.msra.mxu0 0
        %494 = vmatprep.subr.bf16.mxu0 0
        %495 = vmatpush1.bf16.msra.mxu0 0
        %496 = vmatprep.subr.bf16.mxu0 0
        %497 = vmatpush1.bf16.msra.mxu0 0
        %498 = vmatprep.subr.bf16.mxu0 0
        %499 = vmatpush1.bf16.msra.mxu0 0
        %500 = vmatprep.subr.bf16.mxu0 0
        %501 = vmatpush1.bf16.msra.mxu0 0
        %502 = vmatprep.subr.bf16.mxu0 0
        %503 = vmatpush1.bf16.msra.mxu0 0
        %504 = vmatprep.mubr.bf16.mxu0 0
        %505 = vmatmul.mubr.bf16.gmra.mrb[0].mxu0 %v399
        %v506 = vpop.f32.mrb[0].mxu0
        %v507 = vadd.f32 %v422, %v506
        %v508 = vpop.f32.mrb[0].mxu0
        %v509 = vpop.f32.mrb[0].mxu0
        %v510 = vadd.f32 %v422, %v509
        %v511 = vpop.f32.mrb[0].mxu0
        %512 = vmatprep.mubr.bf16.mxu0 0
        %513 = vmatmul.mubr.bf16.gmra.mrb[0].mxu0 %v400
        %v514 = vpop.f32.mrb[0].mxu0
        %v515 = vadd.f32 %v422, %v514
        %v516 = vpop.f32.mrb[0].mxu0
        %v517 = vpop.f32.mrb[0].mxu0
        %v518 = vadd.f32 %v422, %v517
        %v519 = vpop.f32.mrb[0].mxu0
        %520 = vdwg.mxu0
        %v521 = vmax.f32 %v507, 0.0
        %v522 = vmax.f32 %v510, 0.0
        %v523 = vmax.f32 %v515, 0.0
        %v524 = vmax.f32 %v518, 0.0
        %v525 = vpack.c.bf16 %v522, %v521
        %v526 = vpack.c.bf16 %v524, %v523
        %v527 = vld [vmem:[#allocation4] sm:$0xf]
        %v528 = vld [vmem:[#allocation4 + $0x4] sm:$0xf]
        %v529 = vld [vmem:[#allocation4 + $0x8] sm:$0xf]
        %v530 = vld [vmem:[#allocation4 + $0xc] sm:$0xf]
        %v531 = vld [vmem:[#allocation4 + $0x10] sm:$0xf]
        %v532 = vld [vmem:[#allocation4 + $0x14] sm:$0xf]
        %v533 = vld [vmem:[#allocation4 + $0x18] sm:$0xf]
        %v534 = vld [vmem:[#allocation4 + $0x1c] sm:$0xf]
        %v535 = vld [vmem:[#allocation4 + $0x20] sm:$0xf]
        %v536 = vld [vmem:[#allocation4 + $0x24] sm:$0xf]
        %v537 = vld [vmem:[#allocation4 + $0x28] sm:$0xf]
        %v538 = vld [vmem:[#allocation4 + $0x2c] sm:$0xf]
        %v539 = vld [vmem:[#allocation4 + $0x30] sm:$0xf]
        %v540 = vld [vmem:[#allocation4 + $0x34] sm:$0xf]
        %v541 = vld [vmem:[#allocation4 + $0x38] sm:$0xf]
        %v542 = vld [vmem:[#allocation4 + $0x3c] sm:$0xf]
        %v543 = vld [vmem:[%s6] sm:$0x1]
        %v545 = vlaneseq
        %v546 = vshrl.u32 %v545, 7
        %v547 = vsub.s32 0, %v546
        %v548 = vrot.slane %v543, %v547
        %v566 = vunpack.c.l.b16 %v527
        %v567 = vunpack.c.l.b16 %v528
        %v568 = vunpack.c.l.b16 %v529
        %v569 = vunpack.c.l.b16 %v530
        %v570 = vunpack.c.l.b16 %v531
        %v571 = vunpack.c.l.b16 %v532
        %v572 = vunpack.c.l.b16 %v533
        %v573 = vunpack.c.l.b16 %v534
        %v574 = vunpack.c.l.b16 %v535
        %v575 = vunpack.c.l.b16 %v536
        %v576 = vunpack.c.l.b16 %v537
        %v577 = vunpack.c.l.b16 %v538
        %v578 = vunpack.c.l.b16 %v539
        %v579 = vunpack.c.l.b16 %v540
        %v580 = vunpack.c.l.b16 %v541
        %v581 = vunpack.c.l.b16 %v542
        %v582 = vpack.c.b16 %v567, %v566
        %v583 = vpack.c.b16 %v569, %v568
        %v584 = vpack.c.b16 %v571, %v570
        %v585 = vpack.c.b16 %v573, %v572
        %v586 = vpack.c.b16 %v575, %v574
        %v587 = vpack.c.b16 %v577, %v576
        %v588 = vpack.c.b16 %v579, %v578
        %v589 = vpack.c.b16 %v581, %v580
        %598 = vmatprep.subr.bf16.mxu0 0
        %599 = vmatpush1.bf16.msra.mxu0 %v582
        %600 = vmatprep.subr.bf16.mxu0 0
        %601 = vmatpush1.bf16.msra.mxu0 %v583
        %602 = vmatprep.subr.bf16.mxu0 0
        %603 = vmatpush1.bf16.msra.mxu0 %v584
        %604 = vmatprep.subr.bf16.mxu0 0
        %605 = vmatpush1.bf16.msra.mxu0 %v585
        %606 = vmatprep.subr.bf16.mxu0 0
        %607 = vmatpush1.bf16.msra.mxu0 %v586
        %608 = vmatprep.subr.bf16.mxu0 0
        %609 = vmatpush1.bf16.msra.mxu0 %v587
        %610 = vmatprep.subr.bf16.mxu0 0
        %611 = vmatpush1.bf16.msra.mxu0 %v588
        %612 = vmatprep.subr.bf16.mxu0 0
        %613 = vmatpush1.bf16.msra.mxu0 %v589
        %614 = vmatprep.subr.bf16.mxu0 0
        %615 = vmatpush1.bf16.msra.mxu0 0
        %616 = vmatprep.subr.bf16.mxu0 0
        %617 = vmatpush1.bf16.msra.mxu0 0
        %618 = vmatprep.subr.bf16.mxu0 0
        %619 = vmatpush1.bf16.msra.mxu0 0
        %620 = vmatprep.subr.bf16.mxu0 0
        %621 = vmatpush1.bf16.msra.mxu0 0
        %622 = vmatprep.subr.bf16.mxu0 0
        %623 = vmatpush1.bf16.msra.mxu0 0
        %624 = vmatprep.subr.bf16.mxu0 0
        %625 = vmatpush1.bf16.msra.mxu0 0
        %626 = vmatprep.subr.bf16.mxu0 0
        %627 = vmatpush1.bf16.msra.mxu0 0
        %628 = vmatprep.subr.bf16.mxu0 0
        %629 = vmatpush1.bf16.msra.mxu0 0
        %630 = vmatprep.mubr.bf16.mxu0 0
        %631 = vmatmul.mubr.bf16.gmra.mrb[0].mxu0 %v525
        %v632 = vpop.f32.mrb[0].mxu0
        %v633 = vadd.f32 %v548, %v632
        %v634 = vpop.f32.mrb[0].mxu0
        %v635 = vpop.f32.mrb[0].mxu0
        %v636 = vadd.f32 %v548, %v635
        %v637 = vpop.f32.mrb[0].mxu0
        %638 = vmatprep.mubr.bf16.mxu0 0
        %639 = vmatmul.mubr.bf16.gmra.mrb[0].mxu0 %v526
        %v640 = vpop.f32.mrb[0].mxu0
        %v641 = vadd.f32 %v548, %v640
        %v642 = vpop.f32.mrb[0].mxu0
        %v643 = vpop.f32.mrb[0].mxu0
        %v644 = vadd.f32 %v548, %v643
        %v645 = vpop.f32.mrb[0].mxu0
        %646 = vdwg.mxu0
        %vm647 = vcmask 31744
        %648 = vst.msk [vmem:[%s310] sm:$0xff] %vm647, %v633
        %649 = vst.msk [vmem:[%s310 + $0x8] sm:$0xff] %vm647, %v636
        %650 = vst.msk [vmem:[%s310 + $0x10] sm:$0xff] %vm647, %v641
        %651 = vst.msk [vmem:[%s310 + $0x18] sm:$0xff] %vm647, %v644
        %s652 = smul.u32 4, %s20
        %p653 = scmp.lt.s32.totalorder %s652, 7
        %s654 = scalar_select %p653, %s652, 7
        %s655 = smul.addr %s654, 8
        %s656 = scalar_lea.vmem %s7, %s655
        // Predicated region
        $region57: #{tpu_custom_call.1} parent=47 // pred_check
          %p657 = pneg %p190
        $region58: #{tpu_custom_call.1} parent=47 // pred_check_branch
          %659 = sbr.rel (%p657) target = $region60
        $region59: #{tpu_custom_call.1} parent=47 // pred_region
          %s660 = smul.u32 4, %s20
        $region60: #{tpu_custom_call.1} parent=47 // pred_fallthru
          _
      $region48: #{tpu_custom_call.1} parent=5 // pred_fallthru
        _
      %p661 = scmp.le.s32.totalorder 2, %s15
      // Predicated region
      $region61: #{tpu_custom_call.1} parent=5 // pred_check
        %p662 = pneg %p661
      $region62: #{tpu_custom_call.1} parent=5 // pred_check_branch
        %664 = sbr.rel (%p662) target = $region64
      $region63: #{tpu_custom_call.1} parent=5 // pred_region
        %s665 = ssub.s32 %s15, 2
        // Predicated region
        $region65: #{tpu_custom_call.1} parent=63 // pred_check
          %p666 = pneg %p196
        $region66: #{tpu_custom_call.1} parent=63 // pred_check_branch
          %668 = sbr.rel (%p666) target = $region68
        $region67: #{tpu_custom_call.1} parent=63 // pred_region
          %s669 = smul.u32 4, %s21
          %p670 = scmp.lt.s32.totalorder %s669, 7
          %s671 = scalar_select %p670, %s669, 7
          %s672 = smul.addr %s671, 8
          %s673 = scalar_lea.vmem %s7, %s672
        $region68: #{tpu_custom_call.1} parent=63 // pred_fallthru
          _
      $region64: #{tpu_custom_call.1} parent=5 // pred_fallthru
        _
    $region6: #{tpu_custom_call.1} parent=1 // loop_footer
      %s19 = sadd.s32 1, %s15
    $region7: #{tpu_custom_call.1} parent=1 // loop_footer_branch
      %14 = sbr.rel target = $region3
    $region8: #{tpu_custom_call.1} parent=1 // loop_exit
      _
    %674 = vsyncpa [#allocation3], 1
    %s675 = scalar_lea.sflag [#allocation3], 1
    %676 = vsyncpa %s675, 1
    %677 = vsyncpa [#allocation5], 1

</llo_original>
